<compile_context>
chip_gen: v7x
topology: tpu7x:2x2x1
jax: 0.10.0
libtpu: 0.0.40
codegen_flags: <defaults>
</compile_context>

<pallas_src>
import math

import jax
import jax.numpy as jnp
from jax.experimental import pallas as pl
from jax.experimental.pallas import tpu as pltpu


def _one_hot_kernel(idx_ref, expand_ref, o_ref):
    # idx_ref:    (TM, G)    int32   packed indices (G indices per output row)
    # expand_ref: (G, G*C)   bf16/f32   E[g, g*C + c] = 1  (lane expansion matrix)
    # o_ref:      (TM, G*C)  float32 lane-dense packed one-hot output
    g, gc = expand_ref.shape
    c = gc // g
    # Replicate each index into its C consecutive output lanes on the MXU:
    #   rep[r, g*C + c] = idx[r, g]
    # Exact: each output lane is a single 0/1 * index product, f32-accumulated.
    idx = idx_ref[...].astype(expand_ref.dtype)
    rep = jnp.dot(idx, expand_ref[...], preferred_element_type=jnp.float32)
    # Per-lane class pattern: lane l -> l % C  (generated in-kernel, no DMA).
    lane = jax.lax.broadcasted_iota(jnp.int32, (1, gc), 1)
    cls = (lane % c).astype(jnp.float32)
    # out[r, g*C + c] = (idx[r, g] == c)  — exact f32 compare of small ints.
    o_ref[...] = (rep == cls).astype(o_ref.dtype)


def _round_up(x, m):
    return ((x + m - 1) // m) * m


def _vmem_budgets():
    """Return (default_output_tile_bytes, safe_scoped_vmem_bytes)."""
    tile = 4 << 20        # safe everywhere (v5e scoped-VMEM default is 16 MiB)
    scoped = 14 << 20
    try:
        info = pltpu.get_tpu_info()
        vmem = getattr(info, "vmem_capacity_bytes", 0) or 0
        if 0 < vmem <= (64 << 20):   # v7x: 64 MiB VMEM, 32 MiB scoped default,
            tile, scoped = 8 << 20, 28 << 20   # ~3.2 TB/s HBM -> bigger tiles
    except Exception:
        pass
    return tile, scoped


def one_hot_padded(flat_idx, n_classes, *, tile_rows=None):
    """Pallas one-hot of a flat int index vector, padded to a multiple of the
    lane-packing group.  Returns (padded_n, C) float32; padded tail rows are
    the class-0 one-hot and must be ignored by the caller."""
    C = int(n_classes)
    flat = flat_idx.reshape(-1).astype(jnp.int32)
    n = int(flat.shape[0])

    # Pack G indices per output row so each row spans G*C lanes (mult of 128).
    G = 128 // math.gcd(C, 128)
    GC = G * C

    # Pad to the next multiple of G (<= G-1 extra); for very small inputs pad
    # to 8 rows so the sublane extent stays an 8-multiple.
    rows_min = 8
    pad_to = G if pl.cdiv(n, G) >= rows_min else G * rows_min
    pad = (-n) % pad_to
    if pad:
        flat = jnp.concatenate([flat, jnp.zeros((pad,), jnp.int32)])
    rows = (n + pad) // G
    idx2 = flat.reshape(rows, G)

    # bf16 MXU path is exact for C <= 256 (index values bf16-representable).
    mxu_dtype = jnp.bfloat16 if C <= 256 else jnp.float32
    lane = jnp.arange(GC, dtype=jnp.int32)
    expand = (lane[None, :] // C ==
              jnp.arange(G, dtype=jnp.int32)[:, None]).astype(mxu_dtype)  # (G, GC)

    # --- tile selection ---------------------------------------------------
    row_bytes_out = GC * 4
    row_bytes_idx = G * 4
    tile_bytes, scoped_bytes = _vmem_budgets()
    # Clamp so 2x output + 2x index double buffers (+ tiny expand) stay inside
    # the scoped-VMEM budget even for user-supplied tile_rows.
    max_tile = max(8, (scoped_bytes // (2 * (row_bytes_out + row_bytes_idx))) // 8 * 8)
    if tile_rows is None:
        tile_rows = max(8, (tile_bytes // row_bytes_out) // 8 * 8)
    else:
        tile_rows = max(8, _round_up(int(tile_rows), 8))
    tile_rows = min(tile_rows, max_tile)

    tm = min(tile_rows, _round_up(rows, 8))
    grid_n = pl.cdiv(rows, tm)
    if grid_n > 1 and grid_n % 2 == 1:
        # Even step count so v7x's two TensorCores get equal work.
        tm = max(8, _round_up(pl.cdiv(rows, grid_n + 1), 8))
        grid_n = pl.cdiv(rows, tm)

    out = pl.pallas_call(
        _one_hot_kernel,
        out_shape=jax.ShapeDtypeStruct((rows, GC), jnp.float32),
        grid=(grid_n,),
        in_specs=[
            pl.BlockSpec((tm, G), lambda i: (i, 0)),
            pl.BlockSpec((G, GC), lambda i: (0, 0)),
        ],
        out_specs=pl.BlockSpec((tm, GC), lambda i: (i, 0)),
        compiler_params=pltpu.CompilerParams(dimension_semantics=("parallel",)),
    )(idx2, expand)

    # (rows, G*C) -> (rows*G, C) is a pure row-major reshape (free).
    return out.reshape(rows * G, C)


def one_hot(p, n_classes, *, tile_rows=None, force_pallas=False):
    """Pallas equivalent of One_Hot.forward: eye(n_classes)[p], float32.

    Out-of-range / negative indices yield an all-zeros row (documented
    difference from torch, which wraps negatives and errors on OOB)."""
    C = int(n_classes)
    orig_shape = p.shape
    flat = p.reshape(-1).astype(jnp.int32)
    n = int(flat.shape[0])

    # Tiny inputs: fixed kernel costs dominate; XLA's fused path wins.
    if not force_pallas and n * C * 4 < (1 << 20):
        oh = (flat[:, None] == jnp.arange(C, dtype=jnp.int32)).astype(jnp.float32)
        return oh.reshape(*orig_shape, C)

    out = one_hot_padded(flat, C, tile_rows=tile_rows)
    if out.shape[0] != n:
        # Exact torch semantics; consumers that run under the same jit should
        # prefer one_hot_padded() and slice there (lets XLA elide the copy).
        out = out[:n]
    return out.reshape(*orig_shape, C)


if __name__ == "__main__":
    n_classes = 10  # y_dim of the semi-supervised model
    key = jax.random.PRNGKey(0)
    k_small, k_big, k_c300 = jax.random.split(key, 3)

    class_matrix = jnp.eye(n_classes, dtype=jnp.float32)  # torch diag(ones) buffer

    # 1) Small label tensor (batch=2, seq=8) -> tiny-input short-circuit path.
    p_small = jax.random.randint(k_small, (2, 8), 0, n_classes, dtype=jnp.int32)
    out_small = jax.block_until_ready(one_hot(p_small, n_classes))
    assert out_small.shape == p_small.shape + (n_classes,)
    assert out_small.dtype == jnp.float32
    assert jnp.array_equal(out_small, class_matrix[p_small])

    # 2) Pallas path (bf16 MXU expansion), single grid step, padded tail.
    p_big = jax.random.randint(k_big, (3, 700), 0, n_classes, dtype=jnp.int32)
    out_big = jax.block_until_ready(one_hot(p_big, n_classes, force_pallas=True))
    assert jnp.array_equal(out_big, class_matrix[p_big])

    # 3) Pallas path again with a small tile -> multi-step grid + partial block.
    out_big_tiled = jax.block_until_ready(
        one_hot(p_big, n_classes, force_pallas=True, tile_rows=16))
    assert jnp.array_equal(out_big_tiled, class_matrix[p_big])

    # 4) C > 256 exercises the exact f32 MXU fallback.
    C_big = 300
    p_c300 = jax.random.randint(k_c300, (4, 5), 0, C_big, dtype=jnp.int32)
    out_c300 = jax.block_until_ready(one_hot(p_c300, C_big, force_pallas=True))
    assert jnp.array_equal(out_c300, jnp.eye(C_big, dtype=jnp.float32)[p_c300])

    print("KERNEL_OK")
</pallas_src>

<mosaic_0001>
module attributes {stable_mosaic.version = 11 : i64} {
  func.func @_one_hot_kernel(%arg0: i32, %arg1: memref<40x64xi32, #tpu.memory_space<vmem>>, %arg2: memref<64x640xbf16, #tpu.memory_space<vmem>>, %arg3: memref<40x640xf32, #tpu.memory_space<vmem>>) attributes {dimension_semantics = [#tpu.dimension_semantics<parallel>], iteration_bounds = array<i64: 1>, scalar_prefetch = 0 : i64, scratch_operands = 0 : i64, tpu.core_type = #tpu.core_type<tc>, window_params = [{transform_indices = @transform_0, window_bounds = array<i64: 40, 64>}, {pipeline_mode = #tpu.pipeline_mode<synchronous>, transform_indices = @transform_1, window_bounds = array<i64: 64, 640>}, {transform_indices = @transform_2, window_bounds = array<i64: 40, 640>}]} {
    %c0 = arith.constant 0 : index
    %c0_0 = arith.constant 0 : index
    %0 = vector.load %arg1[%c0, %c0_0] : memref<40x64xi32, #tpu.memory_space<vmem>>, vector<40x64xi32>
    %1 = arith.sitofp %0 : vector<40x64xi32> to vector<40x64xbf16>
    %c0_1 = arith.constant 0 : index
    %c0_2 = arith.constant 0 : index
    %2 = vector.load %arg2[%c0_1, %c0_2] : memref<64x640xbf16, #tpu.memory_space<vmem>>, vector<64x640xbf16>
    %cst = arith.constant dense<0.000000e+00> : vector<40x640xf32>
    %3 = tpu.matmul %1, %2, %cst {dimension_numbers = #tpu.dot_dimension_numbers<[1], [0], [0], [1], [0, 0, 1, 1], [], []>} : vector<40x64xbf16>, vector<64x640xbf16>, vector<40x640xf32> -> vector<40x640xf32>
    %4 = tpu.iota {dimensions = array<i32: 1>} : vector<1x640xi32>
    %c10_i32 = arith.constant 10 : i32
    %c0_i32 = arith.constant 0 : i32
    %5 = arith.cmpi eq, %c10_i32, %c0_i32 : i32
    %c1_i32 = arith.constant 1 : i32
    %6 = arith.select %5, %c1_i32, %c10_i32 : i32
    %7 = vector.broadcast %6 : i32 to vector<1x640xi32>
    %8 = arith.remsi %4, %7 : vector<1x640xi32>
    %c0_i32_3 = arith.constant 0 : i32
    %9 = vector.broadcast %c0_i32_3 : i32 to vector<1x640xi32>
    %10 = arith.cmpi ne, %8, %9 : vector<1x640xi32>
    %c0_i32_4 = arith.constant 0 : i32
    %11 = vector.broadcast %c0_i32_4 : i32 to vector<1x640xi32>
    %12 = arith.cmpi slt, %8, %11 : vector<1x640xi32>
    %c0_i32_5 = arith.constant 0 : i32
    %13 = arith.cmpi slt, %6, %c0_i32_5 : i32
    %14 = vector.broadcast %13 : i1 to vector<1x640xi1>
    %15 = vector.broadcast %14 : vector<1x640xi1> to vector<1x640xi1>
    %16 = arith.xori %12, %15 : vector<1x640xi1>
    %17 = arith.andi %16, %10 : vector<1x640xi1>
    %18 = vector.broadcast %6 : i32 to vector<1x640xi32>
    %19 = arith.addi %8, %18 : vector<1x640xi32>
    %20 = arith.select %17, %19, %8 : vector<1x640xi1>, vector<1x640xi32>
    %21 = arith.sitofp %20 : vector<1x640xi32> to vector<1x640xf32>
    %22 = vector.broadcast %21 : vector<1x640xf32> to vector<40x640xf32>
    %23 = arith.cmpf oeq, %3, %22 : vector<40x640xf32>
    %24 = arith.extui %23 : vector<40x640xi1> to vector<40x640xi32>
    %25 = arith.sitofp %24 : vector<40x640xi32> to vector<40x640xf32>
    %c0_6 = arith.constant 0 : index
    %c0_7 = arith.constant 0 : index
    %26 = vector.load %arg3[%c0_6, %c0_7] : memref<40x640xf32, #tpu.memory_space<vmem>>, vector<40x640xf32>
    tpu.vector_store %arg3[%c0_6, %c0_7], %25 {strides = array<i32>} : memref<40x640xf32, #tpu.memory_space<vmem>>, vector<40x640xf32>,
    return
  }
  func.func @transform_0(%arg0: i32) -> (i32, i32) {
    %c0_i32 = arith.constant 0 : i32
    %c0_i32_0 = arith.constant 0 : i32
    return %arg0, %c0_i32 : i32, i32
  }
  func.func @transform_1(%arg0: i32) -> (i32, i32) {
    %c0_i32 = arith.constant 0 : i32
    %c0_i32_0 = arith.constant 0 : i32
    %c0_i32_1 = arith.constant 0 : i32
    return %c0_i32, %c0_i32_0 : i32, i32
  }
  func.func @transform_2(%arg0: i32) -> (i32, i32) {
    %c0_i32 = arith.constant 0 : i32
    %c0_i32_0 = arith.constant 0 : i32
    return %arg0, %c0_i32 : i32, i32
  }
}

</mosaic_0001>

<llo_original>
// kernel: tpu_custom_call.1
$region0: #{tpu_custom_call.1}
  #allocation0 [shape = 'u32[]', space=smem, size = 0x4, offset = 0x4, fixed_abs, tag = 'smem constant byte address 0x4 - core index']
  #allocation1 [shape = 'u32[144,128]{1,0:T(1,128)}', space=vmem, size = 0x12000, scoped, tag = 'internal scratch']
  %s0 = inlined_call_operand.hbm [shape: s32[33,64], index: 0, kind: input, shape index: {}]
  %s1 = inlined_call_operand.hbm [shape: bf16[64,640], index: 1, kind: input, shape index: {}]
  %s2 = inlined_call_operand.hbm [shape: f32[33,640], index: 2, kind: output, shape index: {}]
  %s3 = sld [smem:[#allocation0]]
  $region26: #{tpu_custom_call.1} parent=0
    _
  %s5 = ssub.s32 1, %s3
  %s6 = scalar_select 0, %s5, %s3
  $region1: #{tpu_custom_call.1} parent=0
    #allocation2 [shape = 'u8[20480]{0}', space=vmem, size = 0x5000, scoped, tag = 'input window, operand 0, single buffered']
    #allocation3 [shape = 's32[1]{0}', space=sflag, size = 0x4, scoped, tag = 'scoped memory for tpu_custom_call.1']
    #allocation4 [shape = 's32[1]{0}', space=sflag, size = 0x4, scoped, tag = 'scoped memory for tpu_custom_call.1']
    #allocation5 [shape = 'u8[81920]{0}', space=vmem, size = 0x14000, scoped, tag = 'input window, operand 1, single buffered']
    #allocation6 [shape = 's32[1]{0}', space=sflag, size = 0x4, scoped, tag = 'scoped memory for tpu_custom_call.1']
    #allocation7 [shape = 'u8[102400]{0}', space=vmem, size = 0x19000, scoped, tag = 'output window, operand 0, single buffered']
    %7 = vsyncpa [#allocation3], 0
    %8 = vsyncpa [#allocation6], 0
    %9 = vsyncpa [#allocation4], 0
    // Predicated region
    $region2: #{tpu_custom_call.1} parent=1 // pred_check
      _
    $region3: #{tpu_custom_call.1} parent=1 // pred_check_branch
      %11 = sbr.rel (0) target = $region5
    $region4: #{tpu_custom_call.1} parent=1 // pred_region
      %s13 = ssub.s32 640, 640
      %14 = vsyncadd [#allocation3], %s13
      %s15 = sshll.u32 [#allocation2], 4
      %s16 = int_to_ptr.vmem [resolvable:$true] %s15
      %21 = dma.hbm_to_vmem [thread:$0]  %s0, 640, %s16, [#allocation3], 128, 128, 8
    $region5: #{tpu_custom_call.1} parent=1 // pred_fallthru
      _
    // Predicated region
    $region6: #{tpu_custom_call.1} parent=1 // pred_check
      _
    $region7: #{tpu_custom_call.1} parent=1 // pred_check_branch
      %23 = sbr.rel (0) target = $region9
    $region8: #{tpu_custom_call.1} parent=1 // pred_region
      %s25 = ssub.s32 2560, 2560
      %26 = vsyncadd [#allocation6], %s25
      %s27 = sshll.u32 [#allocation5], 4
      %s28 = int_to_ptr.vmem [resolvable:$true] %s27
      %33 = dma.hbm_to_vmem [thread:$0]  %s1, 2560, %s28, [#allocation6], 320, 320, 20
    $region9: #{tpu_custom_call.1} parent=1 // pred_fallthru
      _
    // Predicated region
    $region10: #{tpu_custom_call.1} parent=1 // pred_check
      _
    $region11: #{tpu_custom_call.1} parent=1 // pred_check_branch
      %35 = sbr.rel (0) target = $region13
    $region12: #{tpu_custom_call.1} parent=1 // pred_region
      %36 = dma.done [#allocation3], 640
    $region13: #{tpu_custom_call.1} parent=1 // pred_fallthru
      _
    // Predicated region
    $region14: #{tpu_custom_call.1} parent=1 // pred_check
      _
    $region15: #{tpu_custom_call.1} parent=1 // pred_check_branch
      %38 = sbr.rel (0) target = $region17
    $region16: #{tpu_custom_call.1} parent=1 // pred_region
      %39 = dma.done [#allocation6], 2560
    $region17: #{tpu_custom_call.1} parent=1 // pred_fallthru
      _
    %v41 = vld [vmem:[#allocation2] sm:$0xff]
    %v42 = vld [vmem:[#allocation2 + $0x8] sm:$0xff]
    %v43 = vld [vmem:[#allocation2 + $0x10] sm:$0xff]
    %v44 = vld [vmem:[#allocation2 + $0x18] sm:$0xff]
    %v45 = vld [vmem:[#allocation2 + $0x20] sm:$0xff]
    %v46 = vcvt.s32.f32 %v41
    %v47 = vcvt.s32.f32 %v42
    %v48 = vcvt.s32.f32 %v43
    %v49 = vcvt.s32.f32 %v44
    %v50 = vcvt.s32.f32 %v45
    %v51 = vpack.c.bf16 %v47, %v46
    %v52 = vpack.c.bf16 %v49, %v48
    %v53 = vpack.c.bf16 %v50, %v50
    %v54 = vld [vmem:[#allocation5] sm:$0xff]
    %v55 = vld [vmem:[#allocation5 + $0x8] sm:$0xff]
    %v56 = vld [vmem:[#allocation5 + $0x10] sm:$0xf]
    %v57 = vld [vmem:[#allocation5 + $0x14] sm:$0xff]
    %v58 = vld [vmem:[#allocation5 + $0x1c] sm:$0xff]
    %v59 = vld [vmem:[#allocation5 + $0x24] sm:$0xf]
    %v60 = vld [vmem:[#allocation5 + $0x28] sm:$0xff]
    %v61 = vld [vmem:[#allocation5 + $0x30] sm:$0xff]
    %v62 = vld [vmem:[#allocation5 + $0x38] sm:$0xf]
    %v63 = vld [vmem:[#allocation5 + $0x3c] sm:$0xff]
    %v64 = vld [vmem:[#allocation5 + $0x44] sm:$0xff]
    %v65 = vld [vmem:[#allocation5 + $0x4c] sm:$0xf]
    %v66 = vld [vmem:[#allocation5 + $0x50] sm:$0xff]
    %v67 = vld [vmem:[#allocation5 + $0x58] sm:$0xff]
    %v68 = vld [vmem:[#allocation5 + $0x60] sm:$0xf]
    %v69 = vld [vmem:[#allocation5 + $0x64] sm:$0xff]
    %v70 = vld [vmem:[#allocation5 + $0x6c] sm:$0xff]
    %v71 = vld [vmem:[#allocation5 + $0x74] sm:$0xf]
    %v72 = vld [vmem:[#allocation5 + $0x78] sm:$0xff]
    %v73 = vld [vmem:[#allocation5 + $0x80] sm:$0xff]
    %v74 = vld [vmem:[#allocation5 + $0x88] sm:$0xf]
    %v75 = vld [vmem:[#allocation5 + $0x8c] sm:$0xff]
    %v76 = vld [vmem:[#allocation5 + $0x94] sm:$0xff]
    %v77 = vld [vmem:[#allocation5 + $0x9c] sm:$0xf]
    %v102 = vunpack.c.l.b16 %v54
    %v103 = vunpack.c.h.b16 %v54
    %v104 = vunpack.c.l.b16 %v55
    %v105 = vunpack.c.h.b16 %v55
    %v106 = vunpack.c.l.b16 %v56
    %v107 = vunpack.c.l.b16 %v57
    %v108 = vunpack.c.h.b16 %v57
    %v109 = vunpack.c.l.b16 %v58
    %v110 = vunpack.c.h.b16 %v58
    %v111 = vunpack.c.l.b16 %v59
    %v112 = vunpack.c.l.b16 %v60
    %v113 = vunpack.c.h.b16 %v60
    %v114 = vunpack.c.l.b16 %v61
    %v115 = vunpack.c.h.b16 %v61
    %v116 = vunpack.c.l.b16 %v62
    %v117 = vunpack.c.l.b16 %v63
    %v118 = vunpack.c.h.b16 %v63
    %v119 = vunpack.c.l.b16 %v64
    %v120 = vunpack.c.h.b16 %v64
    %v121 = vunpack.c.l.b16 %v65
    %v122 = vunpack.c.l.b16 %v66
    %v123 = vunpack.c.h.b16 %v66
    %v124 = vunpack.c.l.b16 %v67
    %v125 = vunpack.c.h.b16 %v67
    %v126 = vunpack.c.l.b16 %v68
    %v127 = vunpack.c.l.b16 %v69
    %v128 = vunpack.c.h.b16 %v69
    %v129 = vunpack.c.l.b16 %v70
    %v130 = vunpack.c.h.b16 %v70
    %v131 = vunpack.c.l.b16 %v71
    %v132 = vunpack.c.l.b16 %v72
    %v133 = vunpack.c.h.b16 %v72
    %v134 = vunpack.c.l.b16 %v73
    %v135 = vunpack.c.h.b16 %v73
    %v136 = vunpack.c.l.b16 %v74
    %v137 = vunpack.c.l.b16 %v75
    %v138 = vunpack.c.h.b16 %v75
    %v139 = vunpack.c.l.b16 %v76
    %v140 = vunpack.c.h.b16 %v76
    %v141 = vunpack.c.l.b16 %v77
    %v142 = vpack.c.b16 %v107, %v102
    %v143 = vpack.c.b16 %v108, %v103
    %v144 = vpack.c.b16 %v109, %v104
    %v145 = vpack.c.b16 %v110, %v105
    %v146 = vpack.c.b16 %v111, %v106
    %v147 = vpack.c.b16 %v117, %v112
    %v148 = vpack.c.b16 %v118, %v113
    %v149 = vpack.c.b16 %v119, %v114
    %v150 = vpack.c.b16 %v120, %v115
    %v151 = vpack.c.b16 %v121, %v116
    %v152 = vpack.c.b16 %v127, %v122
    %v153 = vpack.c.b16 %v128, %v123
    %v154 = vpack.c.b16 %v129, %v124
    %v155 = vpack.c.b16 %v130, %v125
    %v156 = vpack.c.b16 %v131, %v126
    %v157 = vpack.c.b16 %v137, %v132
    %v158 = vpack.c.b16 %v138, %v133
    %v159 = vpack.c.b16 %v139, %v134
    %v160 = vpack.c.b16 %v140, %v135
    %v161 = vpack.c.b16 %v141, %v136
    %vm182 = vcmask 523264
    %v184 = vsel %vm182, %v51, 0
    %v187 = vsel %vm182, %v52, 0
    %v190 = vsel %vm182, %v53, 0
    %192 = vmatprep.subr.bf16.mxu0 %v143
    %193 = vmatpush1.bf16.msra.mxu0 %v142
    %194 = vmatprep.subr.bf16.mxu0 %v148
    %195 = vmatpush1.bf16.msra.mxu0 %v147
    %196 = vmatprep.subr.bf16.mxu0 %v153
    %197 = vmatpush1.bf16.msra.mxu0 %v152
    %198 = vmatprep.subr.bf16.mxu0 %v158
    %199 = vmatpush1.bf16.msra.mxu0 %v157
    %200 = vmatprep.subr.bf16.mxu0 0
    %201 = vmatpush1.bf16.msra.mxu0 0
    %202 = vmatprep.subr.bf16.mxu0 0
    %203 = vmatpush1.bf16.msra.mxu0 0
    %204 = vmatprep.subr.bf16.mxu0 0
    %205 = vmatpush1.bf16.msra.mxu0 0
    %206 = vmatprep.subr.bf16.mxu0 0
    %207 = vmatpush1.bf16.msra.mxu0 0
    %208 = vmatprep.subr.bf16.mxu0 0
    %209 = vmatpush1.bf16.msra.mxu0 0
    %210 = vmatprep.subr.bf16.mxu0 0
    %211 = vmatpush1.bf16.msra.mxu0 0
    %212 = vmatprep.subr.bf16.mxu0 0
    %213 = vmatpush1.bf16.msra.mxu0 0
    %214 = vmatprep.subr.bf16.mxu0 0
    %215 = vmatpush1.bf16.msra.mxu0 0
    %216 = vmatprep.subr.bf16.mxu0 0
    %217 = vmatpush1.bf16.msra.mxu0 0
    %218 = vmatprep.subr.bf16.mxu0 0
    %219 = vmatpush1.bf16.msra.mxu0 0
    %220 = vmatprep.subr.bf16.mxu0 0
    %221 = vmatpush1.bf16.msra.mxu0 0
    %222 = vmatprep.subr.bf16.mxu0 0
    %223 = vmatpush1.bf16.msra.mxu0 0
    %224 = vmatprep.mubr.bf16.mxu0 0
    %225 = vmatmul.mubr.bf16.gmra.mrb[0].mxu0 %v184
    %v226 = vpop.f32.mrb[0].mxu0
    %v227 = vadd.f32 0.0, %v226
    %v228 = vpop.f32.mrb[0].mxu0
    %v229 = vadd.f32 0.0, %v228
    %v230 = vpop.f32.mrb[0].mxu0
    %v231 = vadd.f32 0.0, %v230
    %v232 = vpop.f32.mrb[0].mxu0
    %v233 = vadd.f32 0.0, %v232
    %234 = vmatprep.mubr.bf16.mxu0 0
    %235 = vmatmul.mubr.bf16.gmra.mrb[0].mxu0 %v187
    %v236 = vpop.f32.mrb[0].mxu0
    %v237 = vadd.f32 0.0, %v236
    %v238 = vpop.f32.mrb[0].mxu0
    %v239 = vadd.f32 0.0, %v238
    %v240 = vpop.f32.mrb[0].mxu0
    %v241 = vadd.f32 0.0, %v240
    %v242 = vpop.f32.mrb[0].mxu0
    %v243 = vadd.f32 0.0, %v242
    %244 = vmatprep.mubr.bf16.mxu0 0
    %245 = vmatmul.mubr.bf16.gmra.mrb[0].mxu0 %v190
    %v246 = vpop.f32.mrb[0].mxu0
    %v247 = vadd.f32 0.0, %v246
    %v248 = vpop.f32.mrb[0].mxu0
    %v249 = vadd.f32 0.0, %v248
    %v250 = vpop.f32.mrb[0].mxu0
    %v251 = vpop.f32.mrb[0].mxu0
    %252 = vdwg.mxu0
    %253 = vmatprep.subr.bf16.mxu0 %v145
    %254 = vmatpush1.bf16.msra.mxu0 %v144
    %255 = vmatprep.subr.bf16.mxu0 %v150
    %256 = vmatpush1.bf16.msra.mxu0 %v149
    %257 = vmatprep.subr.bf16.mxu0 %v155
    %258 = vmatpush1.bf16.msra.mxu0 %v154
    %259 = vmatprep.subr.bf16.mxu0 %v160
    %260 = vmatpush1.bf16.msra.mxu0 %v159
    %261 = vmatprep.subr.bf16.mxu0 0
    %262 = vmatpush1.bf16.msra.mxu0 0
    %263 = vmatprep.subr.bf16.mxu0 0
    %264 = vmatpush1.bf16.msra.mxu0 0
    %265 = vmatprep.subr.bf16.mxu0 0
    %266 = vmatpush1.bf16.msra.mxu0 0
    %267 = vmatprep.subr.bf16.mxu0 0
    %268 = vmatpush1.bf16.msra.mxu0 0
    %269 = vmatprep.subr.bf16.mxu0 0
    %270 = vmatpush1.bf16.msra.mxu0 0
    %271 = vmatprep.subr.bf16.mxu0 0
    %272 = vmatpush1.bf16.msra.mxu0 0
    %273 = vmatprep.subr.bf16.mxu0 0
    %274 = vmatpush1.bf16.msra.mxu0 0
    %275 = vmatprep.subr.bf16.mxu0 0
    %276 = vmatpush1.bf16.msra.mxu0 0
    %277 = vmatprep.subr.bf16.mxu0 0
    %278 = vmatpush1.bf16.msra.mxu0 0
    %279 = vmatprep.subr.bf16.mxu0 0
    %280 = vmatpush1.bf16.msra.mxu0 0
    %281 = vmatprep.subr.bf16.mxu0 0
    %282 = vmatpush1.bf16.msra.mxu0 0
    %283 = vmatprep.subr.bf16.mxu0 0
    %284 = vmatpush1.bf16.msra.mxu0 0
    %285 = vmatprep.mubr.bf16.mxu0 0
    %286 = vmatmul.mubr.bf16.gmra.mrb[0].mxu0 %v184
    %v287 = vpop.f32.mrb[0].mxu0
    %v288 = vadd.f32 0.0, %v287
    %v289 = vpop.f32.mrb[0].mxu0
    %v290 = vadd.f32 0.0, %v289
    %v291 = vpop.f32.mrb[0].mxu0
    %v292 = vadd.f32 0.0, %v291
    %v293 = vpop.f32.mrb[0].mxu0
    %v294 = vadd.f32 0.0, %v293
    %295 = vmatprep.mubr.bf16.mxu0 0
    %296 = vmatmul.mubr.bf16.gmra.mrb[0].mxu0 %v187
    %v297 = vpop.f32.mrb[0].mxu0
    %v298 = vadd.f32 0.0, %v297
    %v299 = vpop.f32.mrb[0].mxu0
    %v300 = vadd.f32 0.0, %v299
    %v301 = vpop.f32.mrb[0].mxu0
    %v302 = vadd.f32 0.0, %v301
    %v303 = vpop.f32.mrb[0].mxu0
    %v304 = vadd.f32 0.0, %v303
    %305 = vmatprep.mubr.bf16.mxu0 0
    %306 = vmatmul.mubr.bf16.gmra.mrb[0].mxu0 %v190
    %v307 = vpop.f32.mrb[0].mxu0
    %v308 = vadd.f32 0.0, %v307
    %v309 = vpop.f32.mrb[0].mxu0
    %v310 = vadd.f32 0.0, %v309
    %v311 = vpop.f32.mrb[0].mxu0
    %v312 = vpop.f32.mrb[0].mxu0
    %313 = vdwg.mxu0
    %314 = vmatprep.subr.bf16.mxu0 0
    %315 = vmatpush1.bf16.msra.mxu0 %v146
    %316 = vmatprep.subr.bf16.mxu0 0
    %317 = vmatpush1.bf16.msra.mxu0 %v151
    %318 = vmatprep.subr.bf16.mxu0 0
    %319 = vmatpush1.bf16.msra.mxu0 %v156
    %320 = vmatprep.subr.bf16.mxu0 0
    %321 = vmatpush1.bf16.msra.mxu0 %v161
    %322 = vmatprep.subr.bf16.mxu0 0
    %323 = vmatpush1.bf16.msra.mxu0 0
    %324 = vmatprep.subr.bf16.mxu0 0
    %325 = vmatpush1.bf16.msra.mxu0 0
    %326 = vmatprep.subr.bf16.mxu0 0
    %327 = vmatpush1.bf16.msra.mxu0 0
    %328 = vmatprep.subr.bf16.mxu0 0
    %329 = vmatpush1.bf16.msra.mxu0 0
    %330 = vmatprep.subr.bf16.mxu0 0
    %331 = vmatpush1.bf16.msra.mxu0 0
    %332 = vmatprep.subr.bf16.mxu0 0
    %333 = vmatpush1.bf16.msra.mxu0 0
    %334 = vmatprep.subr.bf16.mxu0 0
    %335 = vmatpush1.bf16.msra.mxu0 0
    %336 = vmatprep.subr.bf16.mxu0 0
    %337 = vmatpush1.bf16.msra.mxu0 0
    %338 = vmatprep.subr.bf16.mxu0 0
    %339 = vmatpush1.bf16.msra.mxu0 0
    %340 = vmatprep.subr.bf16.mxu0 0
    %341 = vmatpush1.bf16.msra.mxu0 0
    %342 = vmatprep.subr.bf16.mxu0 0
    %343 = vmatpush1.bf16.msra.mxu0 0
    %344 = vmatprep.subr.bf16.mxu0 0
    %345 = vmatpush1.bf16.msra.mxu0 0
    %346 = vmatprep.mubr.bf16.mxu0 0
    %347 = vmatmul.mubr.bf16.gmra.mrb[0].mxu0 %v184
    %v348 = vpop.f32.mrb[0].mxu0
    %v349 = vadd.f32 0.0, %v348
    %v350 = vpop.f32.mrb[0].mxu0
    %v351 = vpop.f32.mrb[0].mxu0
    %v352 = vadd.f32 0.0, %v351
    %v353 = vpop.f32.mrb[0].mxu0
    %354 = vmatprep.mubr.bf16.mxu0 0
    %355 = vmatmul.mubr.bf16.gmra.mrb[0].mxu0 %v187
    %v356 = vpop.f32.mrb[0].mxu0
    %v357 = vadd.f32 0.0, %v356
    %v358 = vpop.f32.mrb[0].mxu0
    %v359 = vpop.f32.mrb[0].mxu0
    %v360 = vadd.f32 0.0, %v359
    %v361 = vpop.f32.mrb[0].mxu0
    %362 = vmatprep.mubr.bf16.mxu0 0
    %363 = vmatmul.mubr.bf16.gmra.mrb[0].mxu0 %v190
    %v364 = vpop.f32.mrb[0].mxu0
    %v365 = vadd.f32 0.0, %v364
    %v366 = vpop.f32.mrb[0].mxu0
    %v367 = vpop.f32.mrb[0].mxu0
    %v368 = vpop.f32.mrb[0].mxu0
    %369 = vdwg.mxu0
    %v370 = vlaneseq
    %v371 = vand.u32 %v370, 127
    %v372 = vadd.s32 %v371, 128
    %v373 = vadd.s32 %v371, 256
    %v374 = vadd.s32 %v371, 384
    %v375 = vadd.s32 %v371, 512
    %vm376 = vcmp.lt.s32.totalorder %v371, 0
    %v377 = vsub.s32 0, %v371
    %v378 = vsel %vm376, %v377, %v371
    %v379 = vmul.u32.u64.compose %v378, 3435973837
    %v380 = vextract.low.u32 %v379
    %v381 = vextract.high.u32 %v379
    %v382 = vshrl.u32 %v381, 3
    %v383 = vmul.u32 %v382, 10
    %v384 = vsub.s32 %v378, %v383
    %v385 = vsub.s32 0, %v384
    %v386 = vsel %vm376, %v385, %v384
    %vm387 = vcmp.lt.s32.totalorder %v372, 0
    %v388 = vsub.s32 0, %v372
    %v389 = vsel %vm387, %v388, %v372
    %v390 = vmul.u32.u64.compose %v389, 3435973837
    %v391 = vextract.low.u32 %v390
    %v392 = vextract.high.u32 %v390
    %v393 = vshrl.u32 %v392, 3
    %v394 = vmul.u32 %v393, 10
    %v395 = vsub.s32 %v389, %v394
    %v396 = vsub.s32 0, %v395
    %v397 = vsel %vm387, %v396, %v395
    %vm398 = vcmp.lt.s32.totalorder %v373, 0
    %v399 = vsub.s32 0, %v373
    %v400 = vsel %vm398, %v399, %v373
    %v401 = vmul.u32.u64.compose %v400, 3435973837
    %v402 = vextract.low.u32 %v401
    %v403 = vextract.high.u32 %v401
    %v404 = vshrl.u32 %v403, 3
    %v405 = vmul.u32 %v404, 10
    %v406 = vsub.s32 %v400, %v405
    %v407 = vsub.s32 0, %v406
    %v408 = vsel %vm398, %v407, %v406
    %vm409 = vcmp.lt.s32.totalorder %v374, 0
    %v410 = vsub.s32 0, %v374
    %v411 = vsel %vm409, %v410, %v374
    %v412 = vmul.u32.u64.compose %v411, 3435973837
    %v413 = vextract.low.u32 %v412
    %v414 = vextract.high.u32 %v412
    %v415 = vshrl.u32 %v414, 3
    %v416 = vmul.u32 %v415, 10
    %v417 = vsub.s32 %v411, %v416
    %v418 = vsub.s32 0, %v417
    %v419 = vsel %vm409, %v418, %v417
    %vm420 = vcmp.lt.s32.totalorder %v375, 0
    %v421 = vsub.s32 0, %v375
    %v422 = vsel %vm420, %v421, %v375
    %v423 = vmul.u32.u64.compose %v422, 3435973837
    %v424 = vextract.low.u32 %v423
    %v425 = vextract.high.u32 %v423
    %v426 = vshrl.u32 %v425, 3
    %v427 = vmul.u32 %v426, 10
    %v428 = vsub.s32 %v422, %v427
    %v429 = vsub.s32 0, %v428
    %v430 = vsel %vm420, %v429, %v428
    %vm431 = vcmp.ne.s32.totalorder %v386, 0
    %vm432 = vcmp.ne.s32.totalorder %v397, 0
    %vm433 = vcmp.ne.s32.totalorder %v408, 0
    %vm434 = vcmp.ne.s32.totalorder %v419, 0
    %vm435 = vcmp.ne.s32.totalorder %v430, 0
    %vm436 = vcmp.lt.s32.totalorder %v386, 0
    %vm437 = vcmp.lt.s32.totalorder %v397, 0
    %vm438 = vcmp.lt.s32.totalorder %v408, 0
    %vm439 = vcmp.lt.s32.totalorder %v419, 0
    %vm440 = vcmp.lt.s32.totalorder %v430, 0
    %vm441 = vmand %vm436, %vm431
    %vm442 = vmand %vm437, %vm432
    %vm443 = vmand %vm438, %vm433
    %vm444 = vmand %vm439, %vm434
    %vm445 = vmand %vm440, %vm435
    %v446 = vadd.s32 %v386, 10
    %v447 = vadd.s32 %v397, 10
    %v448 = vadd.s32 %v408, 10
    %v449 = vadd.s32 %v419, 10
    %v450 = vadd.s32 %v430, 10
    %v451 = vsel %vm441, %v446, %v386
    %v452 = vsel %vm442, %v447, %v397
    %v453 = vsel %vm443, %v448, %v408
    %v454 = vsel %vm444, %v449, %v419
    %v455 = vsel %vm445, %v450, %v430
    %v456 = vcvt.s32.f32 %v451
    %v457 = vcvt.s32.f32 %v452
    %v458 = vcvt.s32.f32 %v453
    %v459 = vcvt.s32.f32 %v454
    %v460 = vcvt.s32.f32 %v455
    %vm461 = vcmp.eq.f32.partialorder %v227, %v456
    %vm462 = vcmp.eq.f32.partialorder %v229, %v457
    %vm463 = vcmp.eq.f32.partialorder %v288, %v458
    %vm464 = vcmp.eq.f32.partialorder %v290, %v459
    %vm465 = vcmp.eq.f32.partialorder %v349, %v460
    %vm466 = vcmp.eq.f32.partialorder %v231, %v456
    %vm467 = vcmp.eq.f32.partialorder %v233, %v457
    %vm468 = vcmp.eq.f32.partialorder %v292, %v458
    %vm469 = vcmp.eq.f32.partialorder %v294, %v459
    %vm470 = vcmp.eq.f32.partialorder %v352, %v460
    %vm471 = vcmp.eq.f32.partialorder %v237, %v456
    %vm472 = vcmp.eq.f32.partialorder %v239, %v457
    %vm473 = vcmp.eq.f32.partialorder %v298, %v458
    %vm474 = vcmp.eq.f32.partialorder %v300, %v459
    %vm475 = vcmp.eq.f32.partialorder %v357, %v460
    %vm476 = vcmp.eq.f32.partialorder %v241, %v456
    %vm477 = vcmp.eq.f32.partialorder %v243, %v457
    %vm478 = vcmp.eq.f32.partialorder %v302, %v458
    %vm479 = vcmp.eq.f32.partialorder %v304, %v459
    %vm480 = vcmp.eq.f32.partialorder %v360, %v460
    %vm481 = vcmp.eq.f32.partialorder %v247, %v456
    %vm482 = vcmp.eq.f32.partialorder %v249, %v457
    %vm483 = vcmp.eq.f32.partialorder %v308, %v458
    %vm484 = vcmp.eq.f32.partialorder %v310, %v459
    %vm485 = vcmp.eq.f32.partialorder %v365, %v460
    %v486 = vsel %vm461, 1, 0
    %v487 = vsel %vm462, 1, 0
    %v488 = vsel %vm463, 1, 0
    %v489 = vsel %vm464, 1, 0
    %v490 = vsel %vm465, 1, 0
    %v491 = vsel %vm466, 1, 0
    %v492 = vsel %vm467, 1, 0
    %v493 = vsel %vm468, 1, 0
    %v494 = vsel %vm469, 1, 0
    %v495 = vsel %vm470, 1, 0
    %v496 = vsel %vm471, 1, 0
    %v497 = vsel %vm472, 1, 0
    %v498 = vsel %vm473, 1, 0
    %v499 = vsel %vm474, 1, 0
    %v500 = vsel %vm475, 1, 0
    %v501 = vsel %vm476, 1, 0
    %v502 = vsel %vm477, 1, 0
    %v503 = vsel %vm478, 1, 0
    %v504 = vsel %vm479, 1, 0
    %v505 = vsel %vm480, 1, 0
    %v506 = vsel %vm481, 1, 0
    %v507 = vsel %vm482, 1, 0
    %v508 = vsel %vm483, 1, 0
    %v509 = vsel %vm484, 1, 0
    %v510 = vsel %vm485, 1, 0
    %v511 = vcvt.s32.f32 %v486
    %v512 = vcvt.s32.f32 %v487
    %v513 = vcvt.s32.f32 %v488
    %v514 = vcvt.s32.f32 %v489
    %v515 = vcvt.s32.f32 %v490
    %v516 = vcvt.s32.f32 %v491
    %v517 = vcvt.s32.f32 %v492
    %v518 = vcvt.s32.f32 %v493
    %v519 = vcvt.s32.f32 %v494
    %v520 = vcvt.s32.f32 %v495
    %v521 = vcvt.s32.f32 %v496
    %v522 = vcvt.s32.f32 %v497
    %v523 = vcvt.s32.f32 %v498
    %v524 = vcvt.s32.f32 %v499
    %v525 = vcvt.s32.f32 %v500
    %v526 = vcvt.s32.f32 %v501
    %v527 = vcvt.s32.f32 %v502
    %v528 = vcvt.s32.f32 %v503
    %v529 = vcvt.s32.f32 %v504
    %v530 = vcvt.s32.f32 %v505
    %v531 = vcvt.s32.f32 %v506
    %v532 = vcvt.s32.f32 %v507
    %v533 = vcvt.s32.f32 %v508
    %v534 = vcvt.s32.f32 %v509
    %v535 = vcvt.s32.f32 %v510
    %536 = vst [vmem:[#allocation7] sm:$0xff] %v511
    %537 = vst [vmem:[#allocation7 + $0x8] sm:$0xff] %v512
    %538 = vst [vmem:[#allocation7 + $0x10] sm:$0xff] %v513
    %539 = vst [vmem:[#allocation7 + $0x18] sm:$0xff] %v514
    %540 = vst [vmem:[#allocation7 + $0x20] sm:$0xff] %v515
    %541 = vst [vmem:[#allocation7 + $0x28] sm:$0xff] %v516
    %542 = vst [vmem:[#allocation7 + $0x30] sm:$0xff] %v517
    %543 = vst [vmem:[#allocation7 + $0x38] sm:$0xff] %v518
    %544 = vst [vmem:[#allocation7 + $0x40] sm:$0xff] %v519
    %545 = vst [vmem:[#allocation7 + $0x48] sm:$0xff] %v520
    %546 = vst [vmem:[#allocation7 + $0x50] sm:$0xff] %v521
    %547 = vst [vmem:[#allocation7 + $0x58] sm:$0xff] %v522
    %548 = vst [vmem:[#allocation7 + $0x60] sm:$0xff] %v523
    %549 = vst [vmem:[#allocation7 + $0x68] sm:$0xff] %v524
    %550 = vst [vmem:[#allocation7 + $0x70] sm:$0xff] %v525
    %551 = vst [vmem:[#allocation7 + $0x78] sm:$0xff] %v526
    %552 = vst [vmem:[#allocation7 + $0x80] sm:$0xff] %v527
    %553 = vst [vmem:[#allocation7 + $0x88] sm:$0xff] %v528
    %554 = vst [vmem:[#allocation7 + $0x90] sm:$0xff] %v529
    %555 = vst [vmem:[#allocation7 + $0x98] sm:$0xff] %v530
    %556 = vst [vmem:[#allocation7 + $0xa0] sm:$0xff] %v531
    %557 = vst [vmem:[#allocation7 + $0xa8] sm:$0xff] %v532
    %558 = vst [vmem:[#allocation7 + $0xb0] sm:$0xff] %v533
    %559 = vst [vmem:[#allocation7 + $0xb8] sm:$0xff] %v534
    %560 = vst [vmem:[#allocation7 + $0xc0] sm:$0xff] %v535
    // Predicated region
    $region18: #{tpu_custom_call.1} parent=1 // pred_check
      _
    $region19: #{tpu_custom_call.1} parent=1 // pred_check_branch
      %562 = sbr.rel (0) target = $region21
    $region20: #{tpu_custom_call.1} parent=1 // pred_region
      %s564 = ssub.s32 3200, 3200
      %565 = vsyncadd [#allocation4], %s564
      %s566 = sshll.u32 [#allocation7], 4
      %s567 = int_to_ptr.vmem [resolvable:$true] %s566
      %572 = dma.vmem_to_hbm [thread:$0]  %s567, 3200, %s2, [#allocation4], 640, 640, 40
    $region21: #{tpu_custom_call.1} parent=1 // pred_fallthru
      _
    // Predicated region
    $region22: #{tpu_custom_call.1} parent=1 // pred_check
      _
    $region23: #{tpu_custom_call.1} parent=1 // pred_check_branch
      %574 = sbr.rel (0) target = $region25
    $region24: #{tpu_custom_call.1} parent=1 // pred_region
      %575 = dma.done [#allocation4], 3200
    $region25: #{tpu_custom_call.1} parent=1 // pred_fallthru
      _
    %576 = vsyncpa [#allocation3], 1
    %577 = vsyncpa [#allocation6], 1
    %578 = vsyncpa [#allocation4], 1

</llo_original>
